<compile_context>
chip_gen: v6e
topology: v6e:2x2x1
jax: 0.10.0
libtpu: 0.0.40
codegen_flags: <defaults>
</compile_context>

<pallas_src>
from functools import partial

import jax
import jax.numpy as jnp
from jax.experimental import pallas as pl
from jax.experimental.pallas import tpu as pltpu


def _round8(n: int) -> int:
    return (n + 7) // 8 * 8


def _section_offsets(d_in: int, h1: int, h2: int):
    """Row offsets of the three (weight, bias) sections inside the packed buffer."""
    r1 = 0
    r2 = r1 + _round8(d_in + 1)   # section 1: W1t rows [0, d_in), b1 at row d_in
    r3 = r2 + _round8(h1 + 1)     # section 2: W2t rows [r2, r2+h1), b2 at row r2+h1
    rows = r3 + _round8(h2 + 1)   # section 3: W3t rows [r3, r3+h2), b3 at row r3+h2
    return r1, r2, r3, rows


def _mlp_softmax_kernel(dims, x_ref, p_ref, o_ref):
    # dims are static (trace-time) Python ints -> all slices below are static views.
    d_in, h1, h2, t = dims
    r1, r2, r3, _ = _section_offsets(d_in, h1, h2)

    x = x_ref[...]                                   # [B, d_in]

    w1 = p_ref[r1:r1 + d_in, 0:h1]                   # [d_in, h1]
    b1 = p_ref[r1 + d_in:r1 + d_in + 1, 0:h1]        # [1, h1]
    w2 = p_ref[r2:r2 + h1, 0:h2]                     # [h1, h2]
    b2 = p_ref[r2 + h1:r2 + h1 + 1, 0:h2]            # [1, h2]
    w3 = p_ref[r3:r3 + h2, 0:t]                      # [h2, t]
    b3 = p_ref[r3 + h2:r3 + h2 + 1, 0:t]             # [1, t]

    # fc1 / fc2 / fc3 — plain MXU matmuls, f32 accumulation.
    h = jnp.dot(x, w1, preferred_element_type=jnp.float32) + b1
    h = jnp.dot(h, w2, preferred_element_type=jnp.float32) + b2
    h = jnp.dot(h, w3, preferred_element_type=jnp.float32) + b3

    # Softmax over dim 0 (batch axis), numerically stable — matches nn.Softmax(dim=0).
    m = jnp.max(h, axis=0, keepdims=True)
    e = jnp.exp(h - m)
    s = jnp.sum(e, axis=0, keepdims=True)
    o_ref[...] = (e / s).astype(o_ref.dtype)


def prepare_params(w1, b1, w2, b2, w3, b3):
    """One-time parameter prep (outside the per-call hot path).

    Transposes PyTorch-layout (out, in) weights to MXU-friendly (in, out) and
    packs all weights + biases into ONE f32 buffer. Every weight block starts
    at a sublane offset that is a multiple of 8, so in-kernel slices are fully
    aligned loads. Returns (packed_params, static_dims).
    """
    d_in, h1 = w1.shape[1], w1.shape[0]
    h2, t = w2.shape[0], w3.shape[0]
    r1, r2, r3, rows = _section_offsets(d_in, h1, h2)
    width = max(h1, h2, t)

    p = jnp.zeros((rows, width), jnp.float32)
    p = p.at[r1:r1 + d_in, 0:h1].set(jnp.transpose(w1).astype(jnp.float32))
    p = p.at[r1 + d_in, 0:h1].set(b1.astype(jnp.float32))
    p = p.at[r2:r2 + h1, 0:h2].set(jnp.transpose(w2).astype(jnp.float32))
    p = p.at[r2 + h1, 0:h2].set(b2.astype(jnp.float32))
    p = p.at[r3:r3 + h2, 0:t].set(jnp.transpose(w3).astype(jnp.float32))
    p = p.at[r3 + h2, 0:t].set(b3.astype(jnp.float32))

    dims = (int(d_in), int(h1), int(h2), int(t))
    return p, dims


@partial(jax.jit, static_argnums=(2,))
def mlp_softmax(x, params, dims):
    """x: [B, input_size]; params: packed buffer from prepare_params; dims static."""
    d_in, h1, h2, t = dims
    B = x.shape[0]

    flops = 2 * B * (d_in * h1 + h1 * h2 + h2 * t) + B * (h1 + h2 + 3 * t)
    bytes_accessed = 4 * (x.size + params.size + B * t)

    vmem = pl.BlockSpec(memory_space=pltpu.MemorySpace.VMEM)
    return pl.pallas_call(
        partial(_mlp_softmax_kernel, dims),
        out_shape=jax.ShapeDtypeStruct((B, t), jnp.float32),
        in_specs=[vmem, vmem],
        out_specs=vmem,
        cost_estimate=pl.CostEstimate(
            flops=flops, transcendentals=B * t, bytes_accessed=bytes_accessed),
    )(x, params)


def _init_linear(key, out_features, in_features):
    # Deterministic PyTorch-like init: U(-1/sqrt(in), 1/sqrt(in)) for W and b.
    kw, kb = jax.random.split(key)
    bound = 1.0 / (in_features ** 0.5)
    w = jax.random.uniform(kw, (out_features, in_features), jnp.float32, -bound, bound)
    b = jax.random.uniform(kb, (out_features,), jnp.float32, -bound, bound)
    return w, b


if __name__ == "__main__":
    # Small shapes consistent with the module's forward.
    batch = 8
    input_size = 32
    hidden_dim1 = 64
    hidden_dim2 = 64
    target_size = 16

    key = jax.random.PRNGKey(0)
    kx, k1, k2, k3 = jax.random.split(key, 4)

    x = jax.random.normal(kx, (batch, input_size), jnp.float32)
    w1, b1 = _init_linear(k1, hidden_dim1, input_size)
    w2, b2 = _init_linear(k2, hidden_dim2, hidden_dim1)
    w3, b3 = _init_linear(k3, target_size, hidden_dim2)

    # One-time parameter packing (outside the hot path).
    params, dims = prepare_params(w1, b1, w2, b2, w3, b3)
    params = jax.block_until_ready(params)

    out = mlp_softmax(x, params, dims)
    out = jax.block_until_ready(out)

    # Pure-JAX reference check (softmax over dim 0), PyTorch-layout params.
    h = x @ w1.T + b1
    h = h @ w2.T + b2
    h = h @ w3.T + b3
    ref = jax.nn.softmax(h, axis=0)
    assert jnp.allclose(out, ref, atol=1e-5, rtol=1e-5), "mismatch vs reference"

    print("KERNEL_OK")
</pallas_src>

<mosaic_0001>
module attributes {stable_mosaic.version = 11 : i64} {
  func.func @_mlp_softmax_kernel(%arg0: memref<8x32xf32, #tpu.memory_space<vmem>>, %arg1: memref<184x64xf32, #tpu.memory_space<vmem>>, %arg2: memref<8x16xf32, #tpu.memory_space<vmem>>) attributes {dimension_semantics = [], scalar_prefetch = 0 : i64, scratch_operands = 0 : i64, tpu.core_type = #tpu.core_type<tc>} {
    %c0 = arith.constant 0 : index
    %c0_0 = arith.constant 0 : index
    %0 = vector.load %arg0[%c0, %c0_0] : memref<8x32xf32, #tpu.memory_space<vmem>>, vector<8x32xf32>
    %c0_1 = arith.constant 0 : index
    %c0_2 = arith.constant 0 : index
    %1 = vector.load %arg1[%c0_1, %c0_2] : memref<184x64xf32, #tpu.memory_space<vmem>>, vector<32x64xf32>
    %c32 = arith.constant 32 : index
    %c0_3 = arith.constant 0 : index
    %2 = vector.load %arg1[%c32, %c0_3] : memref<184x64xf32, #tpu.memory_space<vmem>>, vector<1x64xf32>
    %c40 = arith.constant 40 : index
    %c0_4 = arith.constant 0 : index
    %3 = vector.load %arg1[%c40, %c0_4] : memref<184x64xf32, #tpu.memory_space<vmem>>, vector<64x64xf32>
    %c104 = arith.constant 104 : index
    %c0_5 = arith.constant 0 : index
    %4 = vector.load %arg1[%c104, %c0_5] : memref<184x64xf32, #tpu.memory_space<vmem>>, vector<1x64xf32>
    %c112 = arith.constant 112 : index
    %c0_6 = arith.constant 0 : index
    %5 = vector.load %arg1[%c112, %c0_6] : memref<184x64xf32, #tpu.memory_space<vmem>>, vector<64x16xf32>
    %c176 = arith.constant 176 : index
    %c0_7 = arith.constant 0 : index
    %6 = vector.load %arg1[%c176, %c0_7] : memref<184x64xf32, #tpu.memory_space<vmem>>, vector<1x16xf32>
    %cst = arith.constant dense<0.000000e+00> : vector<8x64xf32>
    %7 = tpu.matmul %0, %1, %cst {dimension_numbers = #tpu.dot_dimension_numbers<[1], [0], [0], [1], [0, 0, 1, 1], [], []>} : vector<8x32xf32>, vector<32x64xf32>, vector<8x64xf32> -> vector<8x64xf32>
    %8 = vector.broadcast %2 : vector<1x64xf32> to vector<8x64xf32>
    %9 = arith.addf %7, %8 : vector<8x64xf32>
    %cst_8 = arith.constant dense<0.000000e+00> : vector<8x64xf32>
    %10 = tpu.matmul %9, %3, %cst_8 {dimension_numbers = #tpu.dot_dimension_numbers<[1], [0], [0], [1], [0, 0, 1, 1], [], []>} : vector<8x64xf32>, vector<64x64xf32>, vector<8x64xf32> -> vector<8x64xf32>
    %11 = vector.broadcast %4 : vector<1x64xf32> to vector<8x64xf32>
    %12 = arith.addf %10, %11 : vector<8x64xf32>
    %cst_9 = arith.constant dense<0.000000e+00> : vector<8x16xf32>
    %13 = tpu.matmul %12, %5, %cst_9 {dimension_numbers = #tpu.dot_dimension_numbers<[1], [0], [0], [1], [0, 0, 1, 1], [], []>} : vector<8x64xf32>, vector<64x16xf32>, vector<8x16xf32> -> vector<8x16xf32>
    %14 = vector.broadcast %6 : vector<1x16xf32> to vector<8x16xf32>
    %15 = arith.addf %13, %14 : vector<8x16xf32>
    %cst_10 = arith.constant dense<0xFF800000> : vector<16xf32>
    %16 = vector.multi_reduction <maximumf>, %15, %cst_10 [0] : vector<8x16xf32> to vector<16xf32>
    %17 = vector.shape_cast %16 : vector<16xf32> to vector<1x16xf32>
    %18 = vector.broadcast %17 : vector<1x16xf32> to vector<8x16xf32>
    %19 = arith.subf %15, %18 : vector<8x16xf32>
    %20 = math.exp %19 : vector<8x16xf32>
    %cst_11 = arith.constant dense<0.000000e+00> : vector<16xf32>
    %21 = vector.multi_reduction <add>, %20, %cst_11 [0] : vector<8x16xf32> to vector<16xf32>
    %22 = vector.shape_cast %21 : vector<16xf32> to vector<1x16xf32>
    %23 = vector.broadcast %22 : vector<1x16xf32> to vector<8x16xf32>
    %24 = arith.divf %20, %23 : vector<8x16xf32>
    %c0_12 = arith.constant 0 : index
    %c0_13 = arith.constant 0 : index
    %25 = vector.load %arg2[%c0_12, %c0_13] : memref<8x16xf32, #tpu.memory_space<vmem>>, vector<8x16xf32>
    tpu.vector_store %arg2[%c0_12, %c0_13], %24 {strides = array<i32>} : memref<8x16xf32, #tpu.memory_space<vmem>>, vector<8x16xf32>,
    return
  }
}

</mosaic_0001>

<llo_original>
// kernel: mlp_softmax.1
$region0: #{mlp_softmax.1}
  #allocation0 [shape = 'u32[]', space=smem, size = 0x4, offset = 0x4, fixed_abs, tag = 'smem constant byte address 0x4 - core index']
  #allocation1 [shape = 'u32[144,128]{1,0:T(1,128)}', space=vmem, size = 0x12000, scoped, tag = 'internal scratch']
  %s0 = inlined_call_operand.vmem [shape: f32[8,32], index: 0, kind: input, shape index: {}]
  %s1 = inlined_call_operand.vmem [shape: f32[184,64], index: 1, kind: input, shape index: {}]
  %s2 = inlined_call_operand.hbm [shape: f32[8,16], index: 2, kind: output, shape index: {}]
  %s3 = sld [smem:[#allocation0]]
  $region18: #{mlp_softmax.1} parent=0
    _
  %s5 = ssub.s32 1, %s3
  %s6 = scalar_select 0, %s5, %s3
  $region1: #{mlp_softmax.1} parent=0
    #allocation2 [shape = 'u8[4096]{0}', space=vmem, size = 0x1000, scoped, tag = 'output window, operand 0, single buffered']
    #allocation3 [shape = 's32[1]{0}', space=sflag, size = 0x4, scoped, tag = 'scoped memory for mlp_softmax.1']
    %7 = vsyncpa [#allocation3], 0
    // Predicated region
    $region2: #{mlp_softmax.1} parent=1 // pred_check
      _
    $region3: #{mlp_softmax.1} parent=1 // pred_check_branch
      %9 = sbr.rel (0) target = $region5
    $region4: #{mlp_softmax.1} parent=1 // pred_region
      _
    $region5: #{mlp_softmax.1} parent=1 // pred_fallthru
      _
    // Predicated region
    $region6: #{mlp_softmax.1} parent=1 // pred_check
      _
    $region7: #{mlp_softmax.1} parent=1 // pred_check_branch
      %11 = sbr.rel (0) target = $region9
    $region8: #{mlp_softmax.1} parent=1 // pred_region
      _
    $region9: #{mlp_softmax.1} parent=1 // pred_fallthru
      _
    %v12 = vld [vmem:[%s0] sm:$0xff]
    %v13 = vld [vmem:[%s1] sm:$0xff]
    %v14 = vld [vmem:[%s1 + $0x8] sm:$0xff]
    %v15 = vld [vmem:[%s1 + $0x10] sm:$0xff]
    %v16 = vld [vmem:[%s1 + $0x18] sm:$0xff]
    %v17 = vld [vmem:[%s1 + $0x20] sm:$0x1]
    %v18 = vld [vmem:[%s1 + $0x28] sm:$0xff]
    %v19 = vld [vmem:[%s1 + $0x30] sm:$0xff]
    %v20 = vld [vmem:[%s1 + $0x38] sm:$0xff]
    %v21 = vld [vmem:[%s1 + $0x40] sm:$0xff]
    %v22 = vld [vmem:[%s1 + $0x48] sm:$0xff]
    %v23 = vld [vmem:[%s1 + $0x50] sm:$0xff]
    %v24 = vld [vmem:[%s1 + $0x58] sm:$0xff]
    %v25 = vld [vmem:[%s1 + $0x60] sm:$0xff]
    %v26 = vld [vmem:[%s1 + $0x68] sm:$0x1]
    %v27 = vld [vmem:[%s1 + $0x70] sm:$0xff]
    %v28 = vld [vmem:[%s1 + $0x78] sm:$0xff]
    %v29 = vld [vmem:[%s1 + $0x80] sm:$0xff]
    %v30 = vld [vmem:[%s1 + $0x88] sm:$0xff]
    %v31 = vld [vmem:[%s1 + $0x90] sm:$0xff]
    %v32 = vld [vmem:[%s1 + $0x98] sm:$0xff]
    %v33 = vld [vmem:[%s1 + $0xa0] sm:$0xff]
    %v34 = vld [vmem:[%s1 + $0xa8] sm:$0xff]
    %v35 = vld [vmem:[%s1 + $0xb0] sm:$0x1]
    %v36 = vlaneseq
    %v37 = vshrl.u32 %v36, 7
    %v38 = vsub.s32 0, %v37
    %v39 = vrot.slane %v17, %v38
    %vm40 = vcmask 261120
    %v42 = vsel %vm40, %v12, 0
    %44 = vmatprep.subr.mxu0 0.0
    %45 = vmatpush1.msra.mxu0 0.0
    %46 = vmatprep.subr.mxu0 0.0
    %47 = vmatpush1.msra.mxu0 0.0
    %48 = vmatprep.subr.mxu0 0.0
    %49 = vmatpush1.msra.mxu0 0.0
    %50 = vmatprep.subr.mxu0 0.0
    %51 = vmatpush1.msra.mxu0 0.0
    %52 = vmatprep.subr.mxu0 0.0
    %53 = vmatpush1.msra.mxu0 0.0
    %54 = vmatprep.subr.mxu0 0.0
    %55 = vmatpush1.msra.mxu0 0.0
    %56 = vmatprep.subr.mxu0 0.0
    %57 = vmatpush1.msra.mxu0 0.0
    %58 = vmatprep.subr.mxu0 0.0
    %59 = vmatpush1.msra.mxu0 0.0
    %60 = vmatprep.subr.mxu0 0.0
    %61 = vmatpush1.msra.mxu0 0.0
    %62 = vmatprep.subr.mxu0 0.0
    %63 = vmatpush1.msra.mxu0 0.0
    %64 = vmatprep.subr.mxu0 0.0
    %65 = vmatpush1.msra.mxu0 0.0
    %66 = vmatprep.subr.mxu0 0.0
    %67 = vmatpush1.msra.mxu0 0.0
    %68 = vmatprep.subr.mxu0 0.0
    %69 = vmatpush1.msra.mxu0 %v16
    %70 = vmatprep.subr.mxu0 0.0
    %71 = vmatpush1.msra.mxu0 %v15
    %72 = vmatprep.subr.mxu0 0.0
    %73 = vmatpush1.msra.mxu0 %v14
    %74 = vmatprep.subr.mxu0 0.0
    %75 = vmatpush1.msra.mxu0 %v13
    %76 = vmatprep.subr.mxu0 0.0
    %77 = vmatpush2.msra.mxu0 0.0
    %78 = vmatprep.subr.mxu0 0.0
    %79 = vmatpush2.msra.mxu0 0.0
    %80 = vmatprep.subr.mxu0 0.0
    %81 = vmatpush2.msra.mxu0 0.0
    %82 = vmatprep.subr.mxu0 0.0
    %83 = vmatpush2.msra.mxu0 0.0
    %84 = vmatprep.subr.mxu0 0.0
    %85 = vmatpush2.msra.mxu0 0.0
    %86 = vmatprep.subr.mxu0 0.0
    %87 = vmatpush2.msra.mxu0 0.0
    %88 = vmatprep.subr.mxu0 0.0
    %89 = vmatpush2.msra.mxu0 0.0
    %90 = vmatprep.subr.mxu0 0.0
    %91 = vmatpush2.msra.mxu0 0.0
    %92 = vmatprep.subr.mxu0 0.0
    %93 = vmatpush2.msra.mxu0 0.0
    %94 = vmatprep.subr.mxu0 0.0
    %95 = vmatpush2.msra.mxu0 0.0
    %96 = vmatprep.subr.mxu0 0.0
    %97 = vmatpush2.msra.mxu0 0.0
    %98 = vmatprep.subr.mxu0 0.0
    %99 = vmatpush2.msra.mxu0 0.0
    %100 = vmatprep.subr.mxu0 0.0
    %101 = vmatpush2.msra.mxu0 0.0
    %102 = vmatprep.subr.mxu0 0.0
    %103 = vmatpush2.msra.mxu0 0.0
    %104 = vmatprep.subr.mxu0 0.0
    %105 = vmatpush2.msra.mxu0 0.0
    %106 = vmatprep.subr.mxu0 0.0
    %107 = vmatpush2.msra.mxu0 0.0
    %108 = vmatprep.mubr.f32.mxu0 0.0
    %109 = vmatmul.mubr.f32.gmra.mxu0 %v42
    %v110 = vpop.f32.mrf.mxu0
    %v111 = vadd.f32 %v39, %v110
    %v112 = vpop.f32.mrf.mxu0
    %113 = vdwg.mxu0
    %v114 = vlaneseq
    %v115 = vshrl.u32 %v114, 7
    %v116 = vsub.s32 0, %v115
    %v117 = vrot.slane %v26, %v116
    %vm118 = vcmask 523264
    %v120 = vsel %vm118, %v111, 0
    %122 = vmatprep.subr.mxu0 0.0
    %123 = vmatpush1.msra.mxu0 0.0
    %124 = vmatprep.subr.mxu0 0.0
    %125 = vmatpush1.msra.mxu0 0.0
    %126 = vmatprep.subr.mxu0 0.0
    %127 = vmatpush1.msra.mxu0 0.0
    %128 = vmatprep.subr.mxu0 0.0
    %129 = vmatpush1.msra.mxu0 0.0
    %130 = vmatprep.subr.mxu0 0.0
    %131 = vmatpush1.msra.mxu0 0.0
    %132 = vmatprep.subr.mxu0 0.0
    %133 = vmatpush1.msra.mxu0 0.0
    %134 = vmatprep.subr.mxu0 0.0
    %135 = vmatpush1.msra.mxu0 0.0
    %136 = vmatprep.subr.mxu0 0.0
    %137 = vmatpush1.msra.mxu0 0.0
    %138 = vmatprep.subr.mxu0 0.0
    %139 = vmatpush1.msra.mxu0 %v25
    %140 = vmatprep.subr.mxu0 0.0
    %141 = vmatpush1.msra.mxu0 %v24
    %142 = vmatprep.subr.mxu0 0.0
    %143 = vmatpush1.msra.mxu0 %v23
    %144 = vmatprep.subr.mxu0 0.0
    %145 = vmatpush1.msra.mxu0 %v22
    %146 = vmatprep.subr.mxu0 0.0
    %147 = vmatpush1.msra.mxu0 %v21
    %148 = vmatprep.subr.mxu0 0.0
    %149 = vmatpush1.msra.mxu0 %v20
    %150 = vmatprep.subr.mxu0 0.0
    %151 = vmatpush1.msra.mxu0 %v19
    %152 = vmatprep.subr.mxu0 0.0
    %153 = vmatpush1.msra.mxu0 %v18
    %154 = vmatprep.subr.mxu0 0.0
    %155 = vmatpush2.msra.mxu0 0.0
    %156 = vmatprep.subr.mxu0 0.0
    %157 = vmatpush2.msra.mxu0 0.0
    %158 = vmatprep.subr.mxu0 0.0
    %159 = vmatpush2.msra.mxu0 0.0
    %160 = vmatprep.subr.mxu0 0.0
    %161 = vmatpush2.msra.mxu0 0.0
    %162 = vmatprep.subr.mxu0 0.0
    %163 = vmatpush2.msra.mxu0 0.0
    %164 = vmatprep.subr.mxu0 0.0
    %165 = vmatpush2.msra.mxu0 0.0
    %166 = vmatprep.subr.mxu0 0.0
    %167 = vmatpush2.msra.mxu0 0.0
    %168 = vmatprep.subr.mxu0 0.0
    %169 = vmatpush2.msra.mxu0 0.0
    %170 = vmatprep.subr.mxu0 0.0
    %171 = vmatpush2.msra.mxu0 0.0
    %172 = vmatprep.subr.mxu0 0.0
    %173 = vmatpush2.msra.mxu0 0.0
    %174 = vmatprep.subr.mxu0 0.0
    %175 = vmatpush2.msra.mxu0 0.0
    %176 = vmatprep.subr.mxu0 0.0
    %177 = vmatpush2.msra.mxu0 0.0
    %178 = vmatprep.subr.mxu0 0.0
    %179 = vmatpush2.msra.mxu0 0.0
    %180 = vmatprep.subr.mxu0 0.0
    %181 = vmatpush2.msra.mxu0 0.0
    %182 = vmatprep.subr.mxu0 0.0
    %183 = vmatpush2.msra.mxu0 0.0
    %184 = vmatprep.subr.mxu0 0.0
    %185 = vmatpush2.msra.mxu0 0.0
    %186 = vmatprep.mubr.f32.mxu0 0.0
    %187 = vmatmul.mubr.f32.gmra.mxu0 %v120
    %v188 = vpop.f32.mrf.mxu0
    %v189 = vadd.f32 %v117, %v188
    %v190 = vpop.f32.mrf.mxu0
    %191 = vdwg.mxu0
    %v192 = vlaneseq
    %v193 = vshrl.u32 %v192, 7
    %v194 = vsub.s32 0, %v193
    %v195 = vrot.slane %v35, %v194
    %v197 = vsel %vm118, %v189, 0
    %199 = vmatprep.subr.mxu0 0.0
    %200 = vmatpush1.msra.mxu0 0.0
    %201 = vmatprep.subr.mxu0 0.0
    %202 = vmatpush1.msra.mxu0 0.0
    %203 = vmatprep.subr.mxu0 0.0
    %204 = vmatpush1.msra.mxu0 0.0
    %205 = vmatprep.subr.mxu0 0.0
    %206 = vmatpush1.msra.mxu0 0.0
    %207 = vmatprep.subr.mxu0 0.0
    %208 = vmatpush1.msra.mxu0 0.0
    %209 = vmatprep.subr.mxu0 0.0
    %210 = vmatpush1.msra.mxu0 0.0
    %211 = vmatprep.subr.mxu0 0.0
    %212 = vmatpush1.msra.mxu0 0.0
    %213 = vmatprep.subr.mxu0 0.0
    %214 = vmatpush1.msra.mxu0 0.0
    %215 = vmatprep.subr.mxu0 0.0
    %216 = vmatpush1.msra.mxu0 %v34
    %217 = vmatprep.subr.mxu0 0.0
    %218 = vmatpush1.msra.mxu0 %v33
    %219 = vmatprep.subr.mxu0 0.0
    %220 = vmatpush1.msra.mxu0 %v32
    %221 = vmatprep.subr.mxu0 0.0
    %222 = vmatpush1.msra.mxu0 %v31
    %223 = vmatprep.subr.mxu0 0.0
    %224 = vmatpush1.msra.mxu0 %v30
    %225 = vmatprep.subr.mxu0 0.0
    %226 = vmatpush1.msra.mxu0 %v29
    %227 = vmatprep.subr.mxu0 0.0
    %228 = vmatpush1.msra.mxu0 %v28
    %229 = vmatprep.subr.mxu0 0.0
    %230 = vmatpush1.msra.mxu0 %v27
    %231 = vmatprep.subr.mxu0 0.0
    %232 = vmatpush2.msra.mxu0 0.0
    %233 = vmatprep.subr.mxu0 0.0
    %234 = vmatpush2.msra.mxu0 0.0
    %235 = vmatprep.subr.mxu0 0.0
    %236 = vmatpush2.msra.mxu0 0.0
    %237 = vmatprep.subr.mxu0 0.0
    %238 = vmatpush2.msra.mxu0 0.0
    %239 = vmatprep.subr.mxu0 0.0
    %240 = vmatpush2.msra.mxu0 0.0
    %241 = vmatprep.subr.mxu0 0.0
    %242 = vmatpush2.msra.mxu0 0.0
    %243 = vmatprep.subr.mxu0 0.0
    %244 = vmatpush2.msra.mxu0 0.0
    %245 = vmatprep.subr.mxu0 0.0
    %246 = vmatpush2.msra.mxu0 0.0
    %247 = vmatprep.subr.mxu0 0.0
    %248 = vmatpush2.msra.mxu0 0.0
    %249 = vmatprep.subr.mxu0 0.0
    %250 = vmatpush2.msra.mxu0 0.0
    %251 = vmatprep.subr.mxu0 0.0
    %252 = vmatpush2.msra.mxu0 0.0
    %253 = vmatprep.subr.mxu0 0.0
    %254 = vmatpush2.msra.mxu0 0.0
    %255 = vmatprep.subr.mxu0 0.0
    %256 = vmatpush2.msra.mxu0 0.0
    %257 = vmatprep.subr.mxu0 0.0
    %258 = vmatpush2.msra.mxu0 0.0
    %259 = vmatprep.subr.mxu0 0.0
    %260 = vmatpush2.msra.mxu0 0.0
    %261 = vmatprep.subr.mxu0 0.0
    %262 = vmatpush2.msra.mxu0 0.0
    %263 = vmatprep.mubr.f32.mxu0 0.0
    %264 = vmatmul.mubr.f32.gmra.mxu0 %v197
    %v265 = vpop.f32.mrf.mxu0
    %v266 = vadd.f32 %v195, %v265
    %v267 = vpop.f32.mrf.mxu0
    %268 = vdwg.mxu0
    %vm269 = vcmask 130048
    %v270 = vsel %vm269, %v266, -inf
    %v271 = vrot.slane %v270, 4
    %v272 = vmax.f32 %v270, %v271
    %v273 = vrot.slane %v272, 2
    %v274 = vmax.f32 %v272, %v273
    %v275 = vrot.slane %v274, 1
    %v276 = vmax.f32 %v274, %v275
    %v277 = vsub.f32 %v266, %v276
    %v278 = vmul.f32 %v277, 1.442695
    %v279 = vpow.pop %v278
    %v280 = vsel %vm269, %v279, 0.0
    %v281 = vrot.slane %v280, 4
    %v282 = vadd.f32 %v280, %v281
    %v283 = vrot.slane %v282, 2
    %v284 = vadd.f32 %v282, %v283
    %v285 = vrot.slane %v284, 1
    %v286 = vadd.f32 %v284, %v285
    %v287 = vrcp.pop %v286
    %v288 = vmul.f32 %v279, %v287
    %289 = vst.msk [vmem:[#allocation2] sm:$0xff] %vm269, %v288
    // Predicated region
    $region10: #{mlp_softmax.1} parent=1 // pred_check
      _
    $region11: #{mlp_softmax.1} parent=1 // pred_check_branch
      %291 = sbr.rel (0) target = $region13
    $region12: #{mlp_softmax.1} parent=1 // pred_region
      %s293 = ssub.s32 128, 128
      %294 = vsyncadd [#allocation3], %s293
      %s296 = sshll.u32 [#allocation2], 4
      %s297 = int_to_ptr.vmem [resolvable:$true] %s296
      %299 = dma.vmem_to_hbm [thread:$0]  %s297, 128, %s2, [#allocation3]
    $region13: #{mlp_softmax.1} parent=1 // pred_fallthru
      _
    // Predicated region
    $region14: #{mlp_softmax.1} parent=1 // pred_check
      _
    $region15: #{mlp_softmax.1} parent=1 // pred_check_branch
      %301 = sbr.rel (0) target = $region17
    $region16: #{mlp_softmax.1} parent=1 // pred_region
      %302 = dma.done [#allocation3], 128
    $region17: #{mlp_softmax.1} parent=1 // pred_fallthru
      _
    %303 = vsyncpa [#allocation3], 1

</llo_original>
